<compile_context>
chip_gen: v6e
topology: v6e:2x2x1
jax: 0.10.0
libtpu: 0.0.40
codegen_flags: <defaults>
</compile_context>

<pallas_src>
import jax
import jax.numpy as jnp
from jax import lax
from jax.experimental import pallas as pl
from jax.experimental.pallas import tpu as pltpu


def _gcn_kernel(x_ref, wt_ref, b_ref, ew_ref, o_ref):
    """One graph per grid step, fully resident in VMEM.

    x_ref  : [N, F_in]     node features of this graph (batch dim squeezed)
    wt_ref : [F_in, F_out] linear weight, already transposed (x @ wt)
    b_ref  : [1, F_out]    bias
    ew_ref : [N, N]        dense edge weights, ew[i, j] = weight of edge i->j
    o_ref  : [N, F_out]    output node features of this graph
    """
    ew = ew_ref[...]                                          # [N, N]
    n = ew.shape[0]

    # deg_col[j, 0] = sum_i ew[i, j] — column form straight from the MXU,
    # no lane->sublane shuffle.
    ones_col = jnp.ones((n, 1), dtype=jnp.float32)
    deg_col = lax.dot_general(
        ew, ones_col,
        dimension_numbers=(((0,), (0,)), ((), ())),
        preferred_element_type=jnp.float32)                   # [N, 1]
    dinv_col = jnp.where(deg_col > 0.0, lax.rsqrt(deg_col), 0.0)

    # Linear transform (GCNConv lin, no bias): x @ W^T
    x_lin = jnp.dot(x_ref[...], wt_ref[...],
                    preferred_element_type=jnp.float32)       # [N, F_out]

    # Scale source nodes, aggregate with E^T without materializing A_hat:
    #   y[j, :] = sum_i ew[i, j] * (dinv[i] * x_lin[i, :])
    x_scaled = dinv_col * x_lin                               # [N, F_out]
    y = lax.dot_general(
        ew, x_scaled,
        dimension_numbers=(((0,), (0,)), ((), ())),
        preferred_element_type=jnp.float32)                   # [N, F_out] == E^T @ x_scaled

    # Fused epilogue: scale by target degree, add bias, store.
    o_ref[...] = dinv_col * y + b_ref[...]


def gnn_forward(x, lin_weight, lin_bias, edge_weights, n_chans):
    """GCNConv forward matching the PyTorch module.

    x            : [n_chans, F_in] (single graph, as in the original module)
                   or [B, n_chans, F_in] (batched graphs sharing parameters)
    lin_weight   : [F_out, F_in]
    lin_bias     : [F_out]
    edge_weights : flat [n_chans*n_chans], edge i->j at index i*n_chans + j
    """
    squeeze = (x.ndim == 2)
    if squeeze:
        x = x[None]                                           # [1, N, F_in]
    batch, n, f_in = x.shape
    f_out = lin_weight.shape[0]
    assert n == n_chans

    wt = lin_weight.T.astype(jnp.float32)                     # [F_in, F_out]
    b = lin_bias.reshape(1, f_out).astype(jnp.float32)        # [1, F_out]
    ew_mat = edge_weights.reshape(n, n).astype(jnp.float32)   # [N, N]

    out = pl.pallas_call(
        _gcn_kernel,
        out_shape=jax.ShapeDtypeStruct((batch, n, f_out), jnp.float32),
        grid=(batch,),
        in_specs=[
            # Per-graph block; batch dim squeezed away in the kernel.
            pl.BlockSpec((None, n, f_in), lambda bi: (bi, 0, 0)),
            # Shared parameters: same block every step (no re-fetch needed).
            pl.BlockSpec((f_in, f_out), lambda bi: (0, 0)),
            pl.BlockSpec((1, f_out), lambda bi: (0, 0)),
            pl.BlockSpec((n, n), lambda bi: (0, 0)),
        ],
        out_specs=pl.BlockSpec((None, n, f_out), lambda bi: (bi, 0, 0)),
        compiler_params=pltpu.CompilerParams(
            # Batch steps are independent -> shard across v7x's 2 TensorCores.
            dimension_semantics=("parallel",)),
    )(x.astype(jnp.float32), wt, b, ew_mat)

    return out[0] if squeeze else out


def _reference(x, lin_weight, lin_bias, edge_weights, n_chans):
    """Pure-JAX reference of PyG GCNConv semantics (handles 2-D or 3-D x)."""
    ew = edge_weights.reshape(n_chans, n_chans)
    deg = jnp.sum(ew, axis=0)                                 # deg[j]
    dinv = jnp.where(deg > 0, 1.0 / jnp.sqrt(deg), 0.0)
    a_hat = dinv[:, None] * ew * dinv[None, :]
    x_lin = x @ lin_weight.T                                  # [..., N, F_out]
    out = jnp.einsum('ij,...if->...jf', a_hat, x_lin)         # A_hat^T @ x_lin
    return out + lin_bias


if __name__ == "__main__":
    n_chans = 8        # number of graph nodes (channels)
    num_kernels = 32   # GCNConv in/out feature dim
    batch = 8          # graphs per pallas_call (amortizes launch overhead)

    key = jax.random.PRNGKey(0)
    k_x, k_w, k_ew = jax.random.split(key, 3)

    # Batched node features [B, n_chans, num_kernels]
    x = jax.random.normal(k_x, (batch, n_chans, num_kernels), dtype=jnp.float32)

    # GCNConv parameters: lin.weight [out, in] (glorot-like), bias zeros
    limit = (6.0 / (num_kernels + num_kernels)) ** 0.5
    lin_weight = jax.random.uniform(
        k_w, (num_kernels, num_kernels), minval=-limit, maxval=limit,
        dtype=jnp.float32)
    lin_bias = jnp.zeros((num_kernels,), dtype=jnp.float32)

    # edge_weights ~ torch.rand(n_chans*n_chans) analogue
    edge_weights = jax.random.uniform(
        k_ew, (n_chans * n_chans,), minval=0.0, maxval=1.0, dtype=jnp.float32)

    # Batched run
    out = gnn_forward(x, lin_weight, lin_bias, edge_weights, n_chans)
    out = jax.block_until_ready(out)
    ref = _reference(x, lin_weight, lin_bias, edge_weights, n_chans)
    assert out.shape == (batch, n_chans, num_kernels)
    assert jnp.allclose(out, ref, atol=1e-5, rtol=1e-5), "batched mismatch"

    # Single-graph run (original module signature: input is [n_chans, F])
    out1 = gnn_forward(x[0], lin_weight, lin_bias, edge_weights, n_chans)
    out1 = jax.block_until_ready(out1)
    ref1 = _reference(x[0], lin_weight, lin_bias, edge_weights, n_chans)
    assert out1.shape == (n_chans, num_kernels)
    assert jnp.allclose(out1, ref1, atol=1e-5, rtol=1e-5), "single mismatch"

    print("KERNEL_OK")
</pallas_src>

<mosaic_0001>
module attributes {stable_mosaic.version = 11 : i64} {
  func.func @_gcn_kernel(%arg0: i32, %arg1: memref<1x8x32xf32, #tpu.memory_space<vmem>>, %arg2: memref<32x32xf32, #tpu.memory_space<vmem>>, %arg3: memref<1x32xf32, #tpu.memory_space<vmem>>, %arg4: memref<8x8xf32, #tpu.memory_space<vmem>>, %arg5: memref<1x8x32xf32, #tpu.memory_space<vmem>>) attributes {dimension_semantics = [#tpu.dimension_semantics<parallel>], iteration_bounds = array<i64: 8>, scalar_prefetch = 0 : i64, scratch_operands = 0 : i64, tpu.core_type = #tpu.core_type<tc>, window_params = [{transform_indices = @transform_0, window_bounds = array<i64: 1, 8, 32>}, {pipeline_mode = #tpu.pipeline_mode<synchronous>, transform_indices = @transform_1, window_bounds = array<i64: 32, 32>}, {pipeline_mode = #tpu.pipeline_mode<synchronous>, transform_indices = @transform_2, window_bounds = array<i64: 1, 32>}, {pipeline_mode = #tpu.pipeline_mode<synchronous>, transform_indices = @transform_3, window_bounds = array<i64: 8, 8>}, {transform_indices = @transform_4, window_bounds = array<i64: 1, 8, 32>}]} {
    %c0 = arith.constant 0 : index
    %c0_0 = arith.constant 0 : index
    %0 = vector.load %arg4[%c0, %c0_0] : memref<8x8xf32, #tpu.memory_space<vmem>>, vector<8x8xf32>
    %cst = arith.constant 1.000000e+00 : f32
    %1 = vector.broadcast %cst : f32 to vector<8x1xf32>
    %cst_1 = arith.constant dense<0.000000e+00> : vector<8x1xf32>
    %2 = tpu.matmul %0, %1, %cst_1 {dimension_numbers = #tpu.dot_dimension_numbers<[0], [0], [1], [1], [0, 1, 1, 1], [], []>} : vector<8x8xf32>, vector<8x1xf32>, vector<8x1xf32> -> vector<8x1xf32>
    %cst_2 = arith.constant 0.000000e+00 : f32
    %3 = vector.broadcast %cst_2 : f32 to vector<8x1xf32>
    %4 = arith.cmpf ogt, %2, %3 : vector<8x1xf32>
    %5 = math.rsqrt %2 : vector<8x1xf32>
    %cst_3 = arith.constant 0.000000e+00 : f32
    %6 = vector.broadcast %cst_3 : f32 to vector<8x1xf32>
    %7 = arith.select %4, %5, %6 : vector<8x1xi1>, vector<8x1xf32>
    %c0_4 = arith.constant 0 : index
    %c0_5 = arith.constant 0 : index
    %c0_6 = arith.constant 0 : index
    %8 = vector.load %arg1[%c0_4, %c0_5, %c0_6] : memref<1x8x32xf32, #tpu.memory_space<vmem>>, vector<1x8x32xf32>
    %9 = vector.shape_cast %8 : vector<1x8x32xf32> to vector<8x32xf32>
    %c0_7 = arith.constant 0 : index
    %c0_8 = arith.constant 0 : index
    %10 = vector.load %arg2[%c0_7, %c0_8] : memref<32x32xf32, #tpu.memory_space<vmem>>, vector<32x32xf32>
    %cst_9 = arith.constant dense<0.000000e+00> : vector<8x32xf32>
    %11 = tpu.matmul %9, %10, %cst_9 {dimension_numbers = #tpu.dot_dimension_numbers<[1], [0], [0], [1], [0, 0, 1, 1], [], []>} : vector<8x32xf32>, vector<32x32xf32>, vector<8x32xf32> -> vector<8x32xf32>
    %12 = vector.broadcast %7 : vector<8x1xf32> to vector<8x32xf32>
    %13 = arith.mulf %12, %11 : vector<8x32xf32>
    %cst_10 = arith.constant dense<0.000000e+00> : vector<8x32xf32>
    %14 = tpu.matmul %0, %13, %cst_10 {dimension_numbers = #tpu.dot_dimension_numbers<[0], [0], [1], [1], [0, 1, 1, 1], [], []>} : vector<8x8xf32>, vector<8x32xf32>, vector<8x32xf32> -> vector<8x32xf32>
    %15 = vector.broadcast %7 : vector<8x1xf32> to vector<8x32xf32>
    %16 = arith.mulf %15, %14 : vector<8x32xf32>
    %c0_11 = arith.constant 0 : index
    %c0_12 = arith.constant 0 : index
    %17 = vector.load %arg3[%c0_11, %c0_12] : memref<1x32xf32, #tpu.memory_space<vmem>>, vector<1x32xf32>
    %18 = vector.broadcast %17 : vector<1x32xf32> to vector<8x32xf32>
    %19 = arith.addf %16, %18 : vector<8x32xf32>
    %c0_13 = arith.constant 0 : index
    %c0_14 = arith.constant 0 : index
    %c0_15 = arith.constant 0 : index
    %20 = vector.load %arg5[%c0_13, %c0_14, %c0_15] : memref<1x8x32xf32, #tpu.memory_space<vmem>>, vector<1x8x32xf32>
    %21 = vector.shape_cast %20 : vector<1x8x32xf32> to vector<8x32xf32>
    %22 = vector.shape_cast %19 : vector<8x32xf32> to vector<1x8x32xf32>
    tpu.vector_store %arg5[%c0_13, %c0_14, %c0_15], %22 {strides = array<i32>} : memref<1x8x32xf32, #tpu.memory_space<vmem>>, vector<1x8x32xf32>,
    return
  }
  func.func @transform_0(%arg0: i32) -> (i32, i32, i32) {
    %c0_i32 = arith.constant 0 : i32
    %c0_i32_0 = arith.constant 0 : i32
    %c0_i32_1 = arith.constant 0 : i32
    return %arg0, %c0_i32, %c0_i32_0 : i32, i32, i32
  }
  func.func @transform_1(%arg0: i32) -> (i32, i32) {
    %c0_i32 = arith.constant 0 : i32
    %c0_i32_0 = arith.constant 0 : i32
    %c0_i32_1 = arith.constant 0 : i32
    return %c0_i32, %c0_i32_0 : i32, i32
  }
  func.func @transform_2(%arg0: i32) -> (i32, i32) {
    %c0_i32 = arith.constant 0 : i32
    %c0_i32_0 = arith.constant 0 : i32
    %c0_i32_1 = arith.constant 0 : i32
    return %c0_i32, %c0_i32_0 : i32, i32
  }
  func.func @transform_3(%arg0: i32) -> (i32, i32) {
    %c0_i32 = arith.constant 0 : i32
    %c0_i32_0 = arith.constant 0 : i32
    %c0_i32_1 = arith.constant 0 : i32
    return %c0_i32, %c0_i32_0 : i32, i32
  }
  func.func @transform_4(%arg0: i32) -> (i32, i32, i32) {
    %c0_i32 = arith.constant 0 : i32
    %c0_i32_0 = arith.constant 0 : i32
    %c0_i32_1 = arith.constant 0 : i32
    return %arg0, %c0_i32, %c0_i32_0 : i32, i32, i32
  }
}

</mosaic_0001>

<llo_original>
// kernel: tpu_custom_call.1
$region0: #{tpu_custom_call.1}
  #allocation0 [shape = 'u32[]', space=smem, size = 0x4, offset = 0x4, fixed_abs, tag = 'smem constant byte address 0x4 - core index']
  #allocation1 [shape = 'u32[144,128]{1,0:T(1,128)}', space=vmem, size = 0x12000, scoped, tag = 'internal scratch']
  %s0 = inlined_call_operand.hbm [shape: f32[8,8,32], index: 0, kind: input, shape index: {}]
  %s1 = inlined_call_operand.hbm [shape: f32[32,32], index: 1, kind: input, shape index: {}]
  %s2 = inlined_call_operand.vmem [shape: f32[1,32], index: 2, kind: input, shape index: {}]
  %s3 = inlined_call_operand.hbm [shape: f32[8,8], index: 3, kind: input, shape index: {}]
  %s4 = inlined_call_operand.hbm [shape: f32[8,8,32], index: 4, kind: output, shape index: {}]
  %s5 = sld [smem:[#allocation0]]
  $region61: #{tpu_custom_call.1} parent=0
    _
  %s7 = ssub.s32 1, %s5
  %s8 = scalar_select 0, %s7, %s5
  $region1: #{tpu_custom_call.1} parent=0
    #allocation2 [shape = 'u8[8192]{0}', space=vmem, size = 0x2000, scoped, tag = 'input window, operand 0']
    #allocation3 [shape = 's32[2]{0}', space=sflag, size = 0x8, scoped, tag = 'scoped memory for tpu_custom_call.1']
    #allocation4 [shape = 's32[2]{0}', space=sflag, size = 0x8, scoped, tag = 'scoped memory for tpu_custom_call.1']
    #allocation5 [shape = 'u8[16384]{0}', space=vmem, size = 0x4000, scoped, tag = 'input window, operand 1, single buffered']
    #allocation6 [shape = 's32[1]{0}', space=sflag, size = 0x4, scoped, tag = 'scoped memory for tpu_custom_call.1']
    #allocation7 [shape = 'u8[4096]{0}', space=vmem, size = 0x1000, scoped, tag = 'input window, operand 3, single buffered']
    #allocation8 [shape = 'u8[8192]{0}', space=vmem, size = 0x2000, scoped, tag = 'output window, operand 0']
    %9 = vsyncpa [#allocation3], 0
    %s10 = scalar_lea.sflag [#allocation3], 1
    %11 = vsyncpa %s10, 0
    %12 = vsyncpa [#allocation6], 0
    %13 = vsyncpa [#allocation4], 0
    %s14 = scalar_lea.sflag [#allocation4], 1
    %15 = vsyncpa %s14, 0
    loop: start=0, step=1, limit=10
    $region2: #{tpu_custom_call.1} parent=1 // loop_pre_header
      _
    $region3: #{tpu_custom_call.1} parent=1 // loop_header
      %s17 = sphi 0, %s21
      %p18 = scmp.ge.s32.totalorder %s17, 10
      %s27 = sphi 0, %s29
      %s30 = sphi 0, %s27
      %s31 = sphi 0, %s30
      %s47 = sphi 0, %s31
      %s51 = sphi 0, %s51
      %s53 = sphi 0, %s51
      %s54 = sphi 0, %s53
      %s68 = sphi 0, %s54
      %s72 = sphi 0, %s72
      %s74 = sphi 0, %s72
      %s75 = sphi 0, %s74
      %s89 = sphi 0, %s75
      %s93 = sphi 0, %s93
      %s95 = sphi 0, %s93
      %s96 = sphi 0, %s95
      %s110 = sphi 0, %s96
      %s116 = sphi 0, %s118
      %s119 = sphi 0, %s116
      %s120 = sphi 0, %s119
      %s136 = sphi 0, %s120
    $region4: #{tpu_custom_call.1} parent=1 // loop_header_branch
      %20 = sbr.rel (%p18) target = $region8
    $region5: #{tpu_custom_call.1} parent=1 // loop_body
      %s22 = ssub.s32 %s17, 1
      %s23 = ssub.s32 %s17, 2
      %s24 = sadd.s32 %s17, 1
      %s25 = ssub.s32 %s17, %s24
      %p26 = scmp.eq.s32.totalorder %s25, 0
      %s28 = sadd.s32 %s27, 1
      %s29 = scalar_select %p26, %s27, %s28
      %p32 = pneg %p26
      %p33 = scmp.eq.s32.totalorder %s17, 7
      %p34 = por %p32, %p33
      %p35 = scmp.ne.s32.totalorder %s27, %s30
      %p36 = scmp.eq.s32.totalorder %s17, 0
      %p37 = por %p35, %p36
      %p38 = scmp.ne.s32.totalorder %s27, %s30
      %p39 = scmp.eq.s32.totalorder %s22, 7
      %p40 = por %p38, %p39
      %p41 = scmp.ne.s32.totalorder %s30, %s31
      %p42 = scmp.eq.s32.totalorder %s22, 0
      %p43 = por %p41, %p42
      %p44 = scmp.ne.s32.totalorder %s30, %s31
      %p45 = scmp.eq.s32.totalorder %s23, 7
      %p46 = por %p44, %p45
      %p48 = scmp.ne.s32.totalorder %s31, %s47
      %p49 = scmp.eq.s32.totalorder %s23, 0
      %p50 = por %p48, %p49
      %s52 = sadd.s32 %s51, 1
      %p55 = scmp.eq.s32.totalorder %s17, 7
      %p56 = scmp.ne.s32.totalorder %s51, %s53
      %p57 = scmp.eq.s32.totalorder %s17, 0
      %p58 = por %p56, %p57
      %p59 = scmp.ne.s32.totalorder %s51, %s53
      %p60 = scmp.eq.s32.totalorder %s22, 7
      %p61 = por %p59, %p60
      %p62 = scmp.ne.s32.totalorder %s53, %s54
      %p63 = scmp.eq.s32.totalorder %s22, 0
      %p64 = por %p62, %p63
      %p65 = scmp.ne.s32.totalorder %s53, %s54
      %p66 = scmp.eq.s32.totalorder %s23, 7
      %p67 = por %p65, %p66
      %p69 = scmp.ne.s32.totalorder %s54, %s68
      %p70 = scmp.eq.s32.totalorder %s23, 0
      %p71 = por %p69, %p70
      %s73 = sadd.s32 %s72, 1
      %p76 = scmp.eq.s32.totalorder %s17, 7
      %p77 = scmp.ne.s32.totalorder %s72, %s74
      %p78 = scmp.eq.s32.totalorder %s17, 0
      %p79 = por %p77, %p78
      %p80 = scmp.ne.s32.totalorder %s72, %s74
      %p81 = scmp.eq.s32.totalorder %s22, 7
      %p82 = por %p80, %p81
      %p83 = scmp.ne.s32.totalorder %s74, %s75
      %p84 = scmp.eq.s32.totalorder %s22, 0
      %p85 = por %p83, %p84
      %p86 = scmp.ne.s32.totalorder %s74, %s75
      %p87 = scmp.eq.s32.totalorder %s23, 7
      %p88 = por %p86, %p87
      %p90 = scmp.ne.s32.totalorder %s75, %s89
      %p91 = scmp.eq.s32.totalorder %s23, 0
      %p92 = por %p90, %p91
      %s94 = sadd.s32 %s93, 1
      %p97 = scmp.eq.s32.totalorder %s17, 7
      %p98 = scmp.ne.s32.totalorder %s93, %s95
      %p99 = scmp.eq.s32.totalorder %s17, 0
      %p100 = por %p98, %p99
      %p101 = scmp.ne.s32.totalorder %s93, %s95
      %p102 = scmp.eq.s32.totalorder %s22, 7
      %p103 = por %p101, %p102
      %p104 = scmp.ne.s32.totalorder %s95, %s96
      %p105 = scmp.eq.s32.totalorder %s22, 0
      %p106 = por %p104, %p105
      %p107 = scmp.ne.s32.totalorder %s95, %s96
      %p108 = scmp.eq.s32.totalorder %s23, 7
      %p109 = por %p107, %p108
      %p111 = scmp.ne.s32.totalorder %s96, %s110
      %p112 = scmp.eq.s32.totalorder %s23, 0
      %p113 = por %p111, %p112
      %s114 = ssub.s32 %s17, %s24
      %p115 = scmp.eq.s32.totalorder %s114, 0
      %s117 = sadd.s32 %s116, 1
      %s118 = scalar_select %p115, %s116, %s117
      %p121 = pneg %p115
      %p122 = scmp.eq.s32.totalorder %s17, 7
      %p123 = por %p121, %p122
      %p124 = scmp.ne.s32.totalorder %s116, %s119
      %p125 = scmp.eq.s32.totalorder %s17, 0
      %p126 = por %p124, %p125
      %p127 = scmp.ne.s32.totalorder %s116, %s119
      %p128 = scmp.eq.s32.totalorder %s22, 7
      %p129 = por %p127, %p128
      %p130 = scmp.ne.s32.totalorder %s119, %s120
      %p131 = scmp.eq.s32.totalorder %s22, 0
      %p132 = por %p130, %p131
      %p133 = scmp.ne.s32.totalorder %s119, %s120
      %p134 = scmp.eq.s32.totalorder %s23, 7
      %p135 = por %p133, %p134
      %p137 = scmp.ne.s32.totalorder %s120, %s136
      %p138 = scmp.eq.s32.totalorder %s23, 0
      %p139 = por %p137, %p138
      %p140 = scmp.le.s32.totalorder 1, %s17
      %p141 = scmp.lt.s32.totalorder %s17, 9
      %p142 = pnand %p140, %p141
      %p143 = pneg %p142
      // Predicated region
      $region9: #{tpu_custom_call.1} parent=5 // pred_check
        _
      $region10: #{tpu_custom_call.1} parent=5 // pred_check_branch
        %145 = sbr.rel (%p142) target = $region12
      $region11: #{tpu_custom_call.1} parent=5 // pred_region
        %s146 = ssub.s32 %s17, 1
        // Predicated region
        $region13: #{tpu_custom_call.1} parent=11 // pred_check
          %p147 = pneg %p64
        $region14: #{tpu_custom_call.1} parent=11 // pred_check_branch
          %149 = sbr.rel (%p147) target = $region16
        $region15: #{tpu_custom_call.1} parent=11 // pred_region
          %s151 = ssub.s32 512, 512
          %152 = vsyncadd [#allocation6], %s151
          %s153 = sshll.u32 [#allocation5], 4
          %s154 = int_to_ptr.vmem [resolvable:$true] %s153
          %159 = dma.hbm_to_vmem [thread:$0]  %s1, 512, %s154, [#allocation6], 128, 128, 8
        $region16: #{tpu_custom_call.1} parent=11 // pred_fallthru
          _
        // Predicated region
        $region17: #{tpu_custom_call.1} parent=11 // pred_check
          %p160 = pneg %p85
        $region18: #{tpu_custom_call.1} parent=11 // pred_check_branch
          %162 = sbr.rel (%p160) target = $region20
        $region19: #{tpu_custom_call.1} parent=11 // pred_region
          _
        $region20: #{tpu_custom_call.1} parent=11 // pred_fallthru
          _
        // Predicated region
        $region21: #{tpu_custom_call.1} parent=11 // pred_check
          %p163 = pneg %p106
        $region22: #{tpu_custom_call.1} parent=11 // pred_check_branch
          %165 = sbr.rel (%p163) target = $region24
        $region23: #{tpu_custom_call.1} parent=11 // pred_region
          %s167 = ssub.s32 128, 128
          %168 = vsyncadd [#allocation6], %s167
          %s170 = sshll.u32 [#allocation7], 4
          %s171 = int_to_ptr.vmem [resolvable:$true] %s170
          %173 = dma.hbm_to_vmem [thread:$0]  %s3, 128, %s171, [#allocation6]
        $region24: #{tpu_custom_call.1} parent=11 // pred_fallthru
          _
      $region12: #{tpu_custom_call.1} parent=5 // pred_fallthru
        _
      %p174 = scmp.lt.s32.totalorder %s17, 8
      // Predicated region
      $region25: #{tpu_custom_call.1} parent=5 // pred_check
        %p175 = pneg %p174
      $region26: #{tpu_custom_call.1} parent=5 // pred_check_branch
        %177 = sbr.rel (%p175) target = $region28
      $region27: #{tpu_custom_call.1} parent=5 // pred_region
        // Predicated region
        $region29: #{tpu_custom_call.1} parent=27 // pred_check
          %p178 = pneg %p37
        $region30: #{tpu_custom_call.1} parent=27 // pred_check_branch
          %180 = sbr.rel (%p178) target = $region32
        $region31: #{tpu_custom_call.1} parent=27 // pred_region
          %s181 = sand.u32 %s27, 1
          %s182 = scalar_lea.sflag [#allocation3], %s181
          %s183 = sand.u32 %s27, 1
          %s184 = smul.addr %s183, 8
          %s185 = scalar_lea.vmem [#allocation2], %s184
          %s187 = ssub.s32 128, 128
          %188 = vsyncadd %s182, %s187
          %s189 = smul.addr %s17, 128
          %s190 = scalar_lea.hbm %s0, %s189
          %s192 = sshll.u32 %s185, 4
          %s193 = int_to_ptr.vmem [resolvable:$true] %s192
          %195 = dma.hbm_to_vmem [thread:$0]  %s190, 128, %s193, %s182
        $region32: #{tpu_custom_call.1} parent=27 // pred_fallthru
          _
      $region28: #{tpu_custom_call.1} parent=5 // pred_fallthru
        _
      %p196 = scmp.le.s32.totalorder 1, %s17
      %p197 = scmp.lt.s32.totalorder %s17, 9
      %p198 = pnand %p196, %p197
      %p199 = pneg %p198
      // Predicated region
      $region33: #{tpu_custom_call.1} parent=5 // pred_check
        _
      $region34: #{tpu_custom_call.1} parent=5 // pred_check_branch
        %201 = sbr.rel (%p198) target = $region36
      $region35: #{tpu_custom_call.1} parent=5 // pred_region
        %s202 = ssub.s32 %s17, 1
        %s203 = sand.u32 %s30, 1
        %s204 = scalar_lea.sflag [#allocation3], %s203
        %s205 = sand.u32 %s30, 1
        %s206 = smul.addr %s205, 8
        %s207 = scalar_lea.vmem [#allocation2], %s206
        // Predicated region
        $region37: #{tpu_custom_call.1} parent=35 // pred_check
          %p208 = pneg %p43
        $region38: #{tpu_custom_call.1} parent=35 // pred_check_branch
          %210 = sbr.rel (%p208) target = $region40
        $region39: #{tpu_custom_call.1} parent=35 // pred_region
          %211 = dma.done %s204, 128
        $region40: #{tpu_custom_call.1} parent=35 // pred_fallthru
          _
        // Predicated region
        $region41: #{tpu_custom_call.1} parent=35 // pred_check
          %p212 = pneg %p64
        $region42: #{tpu_custom_call.1} parent=35 // pred_check_branch
          %214 = sbr.rel (%p212) target = $region44
        $region43: #{tpu_custom_call.1} parent=35 // pred_region
          %215 = dma.done [#allocation6], 512
        $region44: #{tpu_custom_call.1} parent=35 // pred_fallthru
          _
        // Predicated region
        $region45: #{tpu_custom_call.1} parent=35 // pred_check
          %p216 = pneg %p106
        $region46: #{tpu_custom_call.1} parent=35 // pred_check_branch
          %218 = sbr.rel (%p216) target = $region48
        $region47: #{tpu_custom_call.1} parent=35 // pred_region
          %219 = dma.done [#allocation6], 128
        $region48: #{tpu_custom_call.1} parent=35 // pred_fallthru
          _
        %s220 = sand.u32 %s30, 1
        %s221 = scalar_lea.sflag [#allocation3], %s220
        %s222 = sand.u32 %s30, 1
        %s223 = smul.addr %s222, 8
        %s224 = scalar_lea.vmem [#allocation2], %s223
        %p225 = pneg %p43
        %p226 = pneg %p40
        %p227 = pneg %p64
        %p228 = pneg %p61
        %p229 = pneg %p85
        %p230 = pneg %p82
        %p231 = pneg %p106
        %p232 = pneg %p103
        %p233 = pneg %p132
        %p234 = pneg %p129
        %s235 = sand.u32 %s119, 1
        %s236 = scalar_lea.sflag [#allocation4], %s235
        %s237 = sand.u32 %s119, 1
        %s238 = smul.addr %s237, 8
        %s239 = scalar_lea.vmem [#allocation8], %s238
        %v240 = vld [vmem:[#allocation7] sm:$0xff]
        %241 = vxpose.xlu0.b32.start [1/16] %v240, 128
        %242 = vxpose.xlu0.b32.cont [2/16] 0.0, 128
        %243 = vxpose.xlu0.b32.cont [3/16] 0.0, 128
        %244 = vxpose.xlu0.b32.cont [4/16] 0.0, 128
        %245 = vxpose.xlu0.b32.cont [5/16] 0.0, 128
        %246 = vxpose.xlu0.b32.cont [6/16] 0.0, 128
        %247 = vxpose.xlu0.b32.cont [7/16] 0.0, 128
        %248 = vxpose.xlu0.b32.cont [8/16] 0.0, 128
        %249 = vxpose.xlu0.b32.cont [9/16] 0.0, 128
        %250 = vxpose.xlu0.b32.cont [10/16] 0.0, 128
        %251 = vxpose.xlu0.b32.cont [11/16] 0.0, 128
        %252 = vxpose.xlu0.b32.cont [12/16] 0.0, 128
        %253 = vxpose.xlu0.b32.cont [13/16] 0.0, 128
        %254 = vxpose.xlu0.b32.cont [14/16] 0.0, 128
        %255 = vxpose.xlu0.b32.cont [15/16] 0.0, 128
        %256 = vxpose.xlu0.b32.end [16/16] 0.0, 128
        %v257 = vpop.trf.xlu0
        %v258 = vpop.trf.xlu0
        %v259 = vpop.trf.xlu0
        %v260 = vpop.trf.xlu0
        %v261 = vpop.trf.xlu0
        %v262 = vpop.trf.xlu0
        %v263 = vpop.trf.xlu0
        %v264 = vpop.trf.xlu0
        %v265 = vpop.trf.xlu0
        %v266 = vpop.trf.xlu0
        %v267 = vpop.trf.xlu0
        %v268 = vpop.trf.xlu0
        %v269 = vpop.trf.xlu0
        %v270 = vpop.trf.xlu0
        %v271 = vpop.trf.xlu0
        %v272 = vpop.trf.xlu0
        %vm273 = vcmask 64512
        %v275 = vsel %vm273, %v257, 0
        %277 = vmatprep.subr.mxu0 0.0
        %278 = vmatpush1.msra.mxu0 0.0
        %279 = vmatprep.subr.mxu0 0.0
        %280 = vmatpush1.msra.mxu0 0.0
        %281 = vmatprep.subr.mxu0 0.0
        %282 = vmatpush1.msra.mxu0 0.0
        %283 = vmatprep.subr.mxu0 0.0
        %284 = vmatpush1.msra.mxu0 0.0
        %285 = vmatprep.subr.mxu0 0.0
        %286 = vmatpush1.msra.mxu0 0.0
        %287 = vmatprep.subr.mxu0 0.0
        %288 = vmatpush1.msra.mxu0 0.0
        %289 = vmatprep.subr.mxu0 0.0
        %290 = vmatpush1.msra.mxu0 0.0
        %291 = vmatprep.subr.mxu0 0.0
        %292 = vmatpush1.msra.mxu0 0.0
        %293 = vmatprep.subr.mxu0 0.0
        %294 = vmatpush1.msra.mxu0 0.0
        %295 = vmatprep.subr.mxu0 0.0
        %296 = vmatpush1.msra.mxu0 0.0
        %297 = vmatprep.subr.mxu0 0.0
        %298 = vmatpush1.msra.mxu0 0.0
        %299 = vmatprep.subr.mxu0 0.0
        %300 = vmatpush1.msra.mxu0 0.0
        %301 = vmatprep.subr.mxu0 0.0
        %302 = vmatpush1.msra.mxu0 0.0
        %303 = vmatprep.subr.mxu0 0.0
        %304 = vmatpush1.msra.mxu0 0.0
        %305 = vmatprep.subr.mxu0 0.0
        %306 = vmatpush1.msra.mxu0 0.0
        %307 = vmatprep.subr.mxu0 0.0
        %308 = vmatpush1.msra.mxu0 1.0
        %309 = vmatprep.subr.mxu0 0.0
        %310 = vmatpush2.msra.mxu0 0.0
        %311 = vmatprep.subr.mxu0 0.0
        %312 = vmatpush2.msra.mxu0 0.0
        %313 = vmatprep.subr.mxu0 0.0
        %314 = vmatpush2.msra.mxu0 0.0
        %315 = vmatprep.subr.mxu0 0.0
        %316 = vmatpush2.msra.mxu0 0.0
        %317 = vmatprep.subr.mxu0 0.0
        %318 = vmatpush2.msra.mxu0 0.0
        %319 = vmatprep.subr.mxu0 0.0
        %320 = vmatpush2.msra.mxu0 0.0
        %321 = vmatprep.subr.mxu0 0.0
        %322 = vmatpush2.msra.mxu0 0.0
        %323 = vmatprep.subr.mxu0 0.0
        %324 = vmatpush2.msra.mxu0 0.0
        %325 = vmatprep.subr.mxu0 0.0
        %326 = vmatpush2.msra.mxu0 0.0
        %327 = vmatprep.subr.mxu0 0.0
        %328 = vmatpush2.msra.mxu0 0.0
        %329 = vmatprep.subr.mxu0 0.0
        %330 = vmatpush2.msra.mxu0 0.0
        %331 = vmatprep.subr.mxu0 0.0
        %332 = vmatpush2.msra.mxu0 0.0
        %333 = vmatprep.subr.mxu0 0.0
        %334 = vmatpush2.msra.mxu0 0.0
        %335 = vmatprep.subr.mxu0 0.0
        %336 = vmatpush2.msra.mxu0 0.0
        %337 = vmatprep.subr.mxu0 0.0
        %338 = vmatpush2.msra.mxu0 0.0
        %339 = vmatprep.subr.mxu0 0.0
        %340 = vmatpush2.msra.mxu0 0.0
        %341 = vmatprep.mubr.f32.mxu0 0.0
        %342 = vmatmul.mubr.f32.gmra.mxu0 %v275
        %v343 = vpop.f32.mrf.mxu0
        %v344 = vadd.f32 0.0, %v343
        %v345 = vpop.f32.mrf.mxu0
        %346 = vdwg.mxu0
        %vm347 = vcmp.gt.f32.partialorder %v344, 0.0
        %v348 = vrsqrt.pop %v344
        %v349 = vsel %vm347, %v348, 0.0
        %v350 = vld [vmem:[%s207] sm:$0xff]
        %v351 = vld [vmem:[#allocation5] sm:$0xff]
        %v352 = vld [vmem:[#allocation5 + $0x8] sm:$0xff]
        %v353 = vld [vmem:[#allocation5 + $0x10] sm:$0xff]
        %v354 = vld [vmem:[#allocation5 + $0x18] sm:$0xff]
        %vm355 = vcmask 261120
        %v357 = vsel %vm355, %v350, 0
        %359 = vmatprep.subr.mxu0 0.0
        %360 = vmatpush1.msra.mxu0 0.0
        %361 = vmatprep.subr.mxu0 0.0
        %362 = vmatpush1.msra.mxu0 0.0
        %363 = vmatprep.subr.mxu0 0.0
        %364 = vmatpush1.msra.mxu0 0.0
        %365 = vmatprep.subr.mxu0 0.0
        %366 = vmatpush1.msra.mxu0 0.0
        %367 = vmatprep.subr.mxu0 0.0
        %368 = vmatpush1.msra.mxu0 0.0
        %369 = vmatprep.subr.mxu0 0.0
        %370 = vmatpush1.msra.mxu0 0.0
        %371 = vmatprep.subr.mxu0 0.0
        %372 = vmatpush1.msra.mxu0 0.0
        %373 = vmatprep.subr.mxu0 0.0
        %374 = vmatpush1.msra.mxu0 0.0
        %375 = vmatprep.subr.mxu0 0.0
        %376 = vmatpush1.msra.mxu0 0.0
        %377 = vmatprep.subr.mxu0 0.0
        %378 = vmatpush1.msra.mxu0 0.0
        %379 = vmatprep.subr.mxu0 0.0
        %380 = vmatpush1.msra.mxu0 0.0
        %381 = vmatprep.subr.mxu0 0.0
        %382 = vmatpush1.msra.mxu0 0.0
        %383 = vmatprep.subr.mxu0 0.0
        %384 = vmatpush1.msra.mxu0 %v354
        %385 = vmatprep.subr.mxu0 0.0
        %386 = vmatpush1.msra.mxu0 %v353
        %387 = vmatprep.subr.mxu0 0.0
        %388 = vmatpush1.msra.mxu0 %v352
        %389 = vmatprep.subr.mxu0 0.0
        %390 = vmatpush1.msra.mxu0 %v351
        %391 = vmatprep.subr.mxu0 0.0
        %392 = vmatpush2.msra.mxu0 0.0
        %393 = vmatprep.subr.mxu0 0.0
        %394 = vmatpush2.msra.mxu0 0.0
        %395 = vmatprep.subr.mxu0 0.0
        %396 = vmatpush2.msra.mxu0 0.0
        %397 = vmatprep.subr.mxu0 0.0
        %398 = vmatpush2.msra.mxu0 0.0
        %399 = vmatprep.subr.mxu0 0.0
        %400 = vmatpush2.msra.mxu0 0.0
        %401 = vmatprep.subr.mxu0 0.0
        %402 = vmatpush2.msra.mxu0 0.0
        %403 = vmatprep.subr.mxu0 0.0
        %404 = vmatpush2.msra.mxu0 0.0
        %405 = vmatprep.subr.mxu0 0.0
        %406 = vmatpush2.msra.mxu0 0.0
        %407 = vmatprep.subr.mxu0 0.0
        %408 = vmatpush2.msra.mxu0 0.0
        %409 = vmatprep.subr.mxu0 0.0
        %410 = vmatpush2.msra.mxu0 0.0
        %411 = vmatprep.subr.mxu0 0.0
        %412 = vmatpush2.msra.mxu0 0.0
        %413 = vmatprep.subr.mxu0 0.0
        %414 = vmatpush2.msra.mxu0 0.0
        %415 = vmatprep.subr.mxu0 0.0
        %416 = vmatpush2.msra.mxu0 0.0
        %417 = vmatprep.subr.mxu0 0.0
        %418 = vmatpush2.msra.mxu0 0.0
        %419 = vmatprep.subr.mxu0 0.0
        %420 = vmatpush2.msra.mxu0 0.0
        %421 = vmatprep.subr.mxu0 0.0
        %422 = vmatpush2.msra.mxu0 0.0
        %423 = vmatprep.mubr.f32.mxu0 0.0
        %424 = vmatmul.mubr.f32.gmra.mxu0 %v357
        %v425 = vpop.f32.mrf.mxu0
        %v426 = vadd.f32 0.0, %v425
        %v427 = vpop.f32.mrf.mxu0
        %428 = vdwg.mxu0
        %430 = vset.pattern.permute.xlu0 0
        %431 = vperm.xlu0 %430, %v349
        %v432 = vpop.permute.xlu0 %431
        %v434 = vmul.f32 %v432, %v426
        %435 = vmatprep.subr.mxu0 0.0
        %436 = vmatpush1.msra.mxu0 0.0
        %437 = vmatprep.subr.mxu0 0.0
        %438 = vmatpush1.msra.mxu0 0.0
        %439 = vmatprep.subr.mxu0 0.0
        %440 = vmatpush1.msra.mxu0 0.0
        %441 = vmatprep.subr.mxu0 0.0
        %442 = vmatpush1.msra.mxu0 0.0
        %443 = vmatprep.subr.mxu0 0.0
        %444 = vmatpush1.msra.mxu0 0.0
        %445 = vmatprep.subr.mxu0 0.0
        %446 = vmatpush1.msra.mxu0 0.0
        %447 = vmatprep.subr.mxu0 0.0
        %448 = vmatpush1.msra.mxu0 0.0
        %449 = vmatprep.subr.mxu0 0.0
        %450 = vmatpush1.msra.mxu0 0.0
        %451 = vmatprep.subr.mxu0 0.0
        %452 = vmatpush1.msra.mxu0 0.0
        %453 = vmatprep.subr.mxu0 0.0
        %454 = vmatpush1.msra.mxu0 0.0
        %455 = vmatprep.subr.mxu0 0.0
        %456 = vmatpush1.msra.mxu0 0.0
        %457 = vmatprep.subr.mxu0 0.0
        %458 = vmatpush1.msra.mxu0 0.0
        %459 = vmatprep.subr.mxu0 0.0
        %460 = vmatpush1.msra.mxu0 0.0
        %461 = vmatprep.subr.mxu0 0.0
        %462 = vmatpush1.msra.mxu0 0.0
        %463 = vmatprep.subr.mxu0 0.0
        %464 = vmatpush1.msra.mxu0 0.0
        %465 = vmatprep.subr.mxu0 0.0
        %466 = vmatpush1.msra.mxu0 %v434
        %467 = vmatprep.subr.mxu0 0.0
        %468 = vmatpush2.msra.mxu0 0.0
        %469 = vmatprep.subr.mxu0 0.0
        %470 = vmatpush2.msra.mxu0 0.0
        %471 = vmatprep.subr.mxu0 0.0
        %472 = vmatpush2.msra.mxu0 0.0
        %473 = vmatprep.subr.mxu0 0.0
        %474 = vmatpush2.msra.mxu0 0.0
        %475 = vmatprep.subr.mxu0 0.0
        %476 = vmatpush2.msra.mxu0 0.0
        %477 = vmatprep.subr.mxu0 0.0
        %478 = vmatpush2.msra.mxu0 0.0
        %479 = vmatprep.subr.mxu0 0.0
        %480 = vmatpush2.msra.mxu0 0.0
        %481 = vmatprep.subr.mxu0 0.0
        %482 = vmatpush2.msra.mxu0 0.0
        %483 = vmatprep.subr.mxu0 0.0
        %484 = vmatpush2.msra.mxu0 0.0
        %485 = vmatprep.subr.mxu0 0.0
        %486 = vmatpush2.msra.mxu0 0.0
        %487 = vmatprep.subr.mxu0 0.0
        %488 = vmatpush2.msra.mxu0 0.0
        %489 = vmatprep.subr.mxu0 0.0
        %490 = vmatpush2.msra.mxu0 0.0
        %491 = vmatprep.subr.mxu0 0.0
        %492 = vmatpush2.msra.mxu0 0.0
        %493 = vmatprep.subr.mxu0 0.0
        %494 = vmatpush2.msra.mxu0 0.0
        %495 = vmatprep.subr.mxu0 0.0
        %496 = vmatpush2.msra.mxu0 0.0
        %497 = vmatprep.subr.mxu0 0.0
        %498 = vmatpush2.msra.mxu0 0.0
        %499 = vmatprep.mubr.f32.mxu0 0.0
        %500 = vmatmul.mubr.f32.gmra.mxu0 %v275
        %v501 = vpop.f32.mrf.mxu0
        %v502 = vadd.f32 0.0, %v501
        %v503 = vpop.f32.mrf.mxu0
        %504 = vdwg.mxu0
        %v505 = vmul.f32 %v432, %v502
        %v506 = vld [vmem:[%s2] sm:$0x1]
        %v508 = vlaneseq
        %v509 = vshrl.u32 %v508, 7
        %v510 = vsub.s32 0, %v509
        %v511 = vrot.slane %v506, %v510
        %v513 = vadd.f32 %v505, %v511
        %514 = vst.msk [vmem:[%s239] sm:$0xff] %vm355, %v513
        %s515 = sand.u32 %s119, 1
        %s516 = scalar_lea.sflag [#allocation4], %s515
        %s517 = sand.u32 %s119, 1
        %s518 = smul.addr %s517, 8
        %s519 = scalar_lea.vmem [#allocation8], %s518
        // Predicated region
        $region49: #{tpu_custom_call.1} parent=35 // pred_check
          %p520 = pneg %p129
        $region50: #{tpu_custom_call.1} parent=35 // pred_check_branch
          %522 = sbr.rel (%p520) target = $region52
        $region51: #{tpu_custom_call.1} parent=35 // pred_region
          %s524 = ssub.s32 128, 128
          %525 = vsyncadd %s516, %s524
          %s526 = smul.addr %s22, 128
          %s527 = scalar_lea.hbm %s4, %s526
          %s529 = sshll.u32 %s519, 4
          %s530 = int_to_ptr.vmem [resolvable:$true] %s529
          %532 = dma.vmem_to_hbm [thread:$0]  %s530, 128, %s527, %s516
        $region52: #{tpu_custom_call.1} parent=35 // pred_fallthru
          _
      $region36: #{tpu_custom_call.1} parent=5 // pred_fallthru
        _
      %p533 = scmp.le.s32.totalorder 2, %s17
      // Predicated region
      $region53: #{tpu_custom_call.1} parent=5 // pred_check
        %p534 = pneg %p533
      $region54: #{tpu_custom_call.1} parent=5 // pred_check_branch
        %536 = sbr.rel (%p534) target = $region56
      $region55: #{tpu_custom_call.1} parent=5 // pred_region
        %s537 = ssub.s32 %s17, 2
        // Predicated region
        $region57: #{tpu_custom_call.1} parent=55 // pred_check
          %p538 = pneg %p135
        $region58: #{tpu_custom_call.1} parent=55 // pred_check_branch
          %540 = sbr.rel (%p538) target = $region60
        $region59: #{tpu_custom_call.1} parent=55 // pred_region
          %s541 = sand.u32 %s120, 1
          %s542 = scalar_lea.sflag [#allocation4], %s541
          %s543 = sand.u32 %s120, 1
          %s544 = smul.addr %s543, 8
          %s545 = scalar_lea.vmem [#allocation8], %s544
          %546 = dma.done %s542, 128
        $region60: #{tpu_custom_call.1} parent=55 // pred_fallthru
          _
      $region56: #{tpu_custom_call.1} parent=5 // pred_fallthru
        _
    $region6: #{tpu_custom_call.1} parent=1 // loop_footer
      %s21 = sadd.s32 1, %s17
    $region7: #{tpu_custom_call.1} parent=1 // loop_footer_branch
      %16 = sbr.rel target = $region3
    $region8: #{tpu_custom_call.1} parent=1 // loop_exit
      _
    %547 = vsyncpa [#allocation3], 1
    %s548 = scalar_lea.sflag [#allocation3], 1
    %549 = vsyncpa %s548, 1
    %550 = vsyncpa [#allocation6], 1
    %551 = vsyncpa [#allocation4], 1
    %s552 = scalar_lea.sflag [#allocation4], 1
    %553 = vsyncpa %s552, 1

</llo_original>
